<compile_context>
chip_gen: v6e
topology: v6e:2x2x1
jax: 0.10.0
libtpu: 0.0.40
codegen_flags: <defaults>
</compile_context>

<pallas_src>
import math

import jax
import jax.numpy as jnp
from jax import lax
from jax.experimental import pallas as pl
from jax.experimental.pallas import tpu as pltpu


def _tpu_vmem_bytes():
    """Best-effort VMEM capacity query; falls back to the smallest current gen."""
    try:
        return int(pltpu.get_tpu_info().vmem_capacity_bytes)
    except Exception:
        return 64 << 20  # v7x per-core VMEM (most constrained generation)


def _largest_divisor_tile(dim, cap, quantum):
    """Largest t <= cap with t % quantum == 0 and dim % t == 0 (else full dim)."""
    if dim <= cap:
        return dim
    t = (min(cap, dim) // quantum) * quantum
    while t >= quantum:
        if dim % t == 0:
            return t
        t -= quantum
    return dim  # no friendly divisor: fall back to a single full-extent tile


def _pick_tiles(B, Cj, D, w_itemsize):
    """Generation-aware tile choice: keep the double-buffered per-step working
    set (x tile, W tile, inv_w tile, output slab) well inside scoped VMEM."""
    vmem = _tpu_vmem_bytes()
    budget = min(vmem // 8, 16 << 20)  # bytes for all pipelined per-step buffers
    tm = _largest_divisor_tile(B, cap=256, quantum=8)
    # 2 * (tm*D*4 [x f32] + tn*D*w_itemsize [W] + tn*4 [inv_w] + tm*tn*4 [out]) <= budget
    denom = D * w_itemsize + 4 + tm * 4
    tn_cap = max(128, (budget // 2 - tm * D * 4) // denom)
    tn = _largest_divisor_tile(Cj, cap=tn_cap, quantum=128)
    return tm, tn


def _dist_cosine_kernel(x_ref, w_ref, invw_ref, o_ref):
    # x_ref   : (tm, D)  f32            batch rows for (shard d, batch tile i)
    # w_ref   : (tn, D)  compute dtype  class rows for (shard d, class tile j)
    # invw_ref: (1, tn)  f32            precomputed 1/max(||w_row||, eps)
    # o_ref   : (tm, tn) f32            slab of the fused (B, C_total) cosine matrix
    x = x_ref[...].astype(jnp.float32)
    # F.normalize(x, dim=1, eps=1e-12): x / max(||x||, eps) == x * rsqrt(max(||x||^2, eps^2))
    inv_x = lax.rsqrt(jnp.maximum(jnp.sum(x * x, axis=-1, keepdims=True), 1e-24))
    xn = (x * inv_x).astype(w_ref.dtype)
    # Contract the shared D axis directly: no wn.T / XLU transpose, straight to MXU.
    acc = lax.dot_general(
        xn, w_ref[...],
        dimension_numbers=(((1,), (1,)), ((), ())),
        preferred_element_type=jnp.float32)
    # Fold the (hoisted) W row norms in as a cheap column scale.
    o_ref[...] = (acc * invw_ref[...]).astype(o_ref.dtype)


def dist_cosine_fc(x_stack, w_stack, inv_w, *, tm=None, tn=None):
    """Fused forward.

    x_stack : (n_dev, B, D)     per-device input replicas (f32)
    w_stack : (n_dev, C_j, D)   per-device weight shards (bf16 or f32)
    inv_w   : (1, n_dev*C_j)    precomputed 1/max(||w_row||, eps), f32
    returns : (B, n_dev*C_j)    column block d = normalize(x_d) @ normalize(W_d).T
    """
    n_dev, B, D = x_stack.shape
    n_dev_w, Cj, D_w = w_stack.shape
    assert n_dev == n_dev_w and D == D_w
    C_total = n_dev * Cj
    assert inv_w.shape == (1, C_total)

    if tm is None or tn is None:
        tm_d, tn_d = _pick_tiles(B, Cj, D, jnp.dtype(w_stack.dtype).itemsize)
        tm = tm if tm is not None else tm_d
        tn = tn if tn is not None else tn_d
    assert B % tm == 0 and Cj % tn == 0, "tile sizes must divide (B, C_j)"
    # Lane-dense output stores: output lane block must be a 128 multiple (or the
    # full class axis).
    assert tn % 128 == 0 or tn == C_total, (
        "per-shard class count must be a multiple of 128 when sharded")
    # TODO(synk): pad ragged class shards (C_j % 128 != 0 with n_dev > 1) to a
    # 128 multiple and slice the padded columns off after the call.

    cjt = Cj // tn
    grid = (n_dev, B // tm, cjt)

    return pl.pallas_call(
        _dist_cosine_kernel,
        out_shape=jax.ShapeDtypeStruct((B, C_total), jnp.float32),
        grid_spec=pltpu.PrefetchScalarGridSpec(
            num_scalar_prefetch=0,
            grid=grid,
            in_specs=[
                # x tile reused across the (innermost) class axis.
                pl.BlockSpec((None, tm, D), lambda d, i, j: (d, i, 0)),
                pl.BlockSpec((None, tn, D), lambda d, i, j: (d, j, 0)),
                pl.BlockSpec((1, tn), lambda d, i, j: (0, d * cjt + j)),
            ],
            # Write each slab straight into its final position of (B, C_total).
            out_specs=pl.BlockSpec((tm, tn), lambda d, i, j: (i, d * cjt + j)),
        ),
        compiler_params=pltpu.CompilerParams(
            dimension_semantics=("parallel", "parallel", "parallel"),
            vmem_limit_bytes=int(min(_tpu_vmem_bytes() // 2, 64 << 20)),
        ),
    )(x_stack.astype(jnp.float32), w_stack, inv_w.astype(jnp.float32))


class DistFC:
    """JAX/Pallas re-implementation of Dist_FC.forward (model-parallel cosine FC)."""

    def __init__(self, in_features, out_features, n_devices, key):
        assert out_features % n_devices == 0
        self.in_features = in_features
        self.out_features = out_features
        self.n_devices = n_devices
        # nn.init.xavier_uniform_(torch.FloatTensor(out_features, in_features))
        bound = math.sqrt(6.0 / (in_features + out_features))
        full_w = jax.random.uniform(
            key, (out_features, in_features),
            minval=-bound, maxval=bound, dtype=jnp.float32)
        cj = out_features // n_devices
        # torch.chunk(weights, n_devices, dim=0) -> stacked (n_dev, C_j, D)
        self.w_stack = full_w.reshape(n_devices, cj, in_features)
        # bf16 copy kept resident for the MXU fast path (halves W HBM traffic).
        self.w_stack_bf16 = self.w_stack.astype(jnp.bfloat16)
        # Hoisted once: per-class 1/max(||w_row||, eps), laid out in the same
        # column order as the fused output.
        ssq = jnp.sum(full_w * full_w, axis=-1)
        self.inv_w = lax.rsqrt(jnp.maximum(ssq, 1e-24)).reshape(1, out_features)

    def __call__(self, inputs, *, compute_dtype=jnp.bfloat16, tm=None, tn=None):
        # inputs: list of (B, in_features) arrays, one per simulated device
        # (the threading/.to(GPU) dispatch becomes a stacked leading shard axis).
        n = self.n_devices
        assert len(inputs) == n
        x_stack = jnp.stack([jnp.asarray(x, jnp.float32) for x in inputs], axis=0)
        B = x_stack.shape[1]
        assert B % n == 0
        if jnp.dtype(compute_dtype) == jnp.dtype(jnp.bfloat16):
            w = self.w_stack_bf16
        else:
            w = self.w_stack.astype(compute_dtype)
        full = dist_cosine_fc(x_stack, w, self.inv_w, tm=tm, tn=tn)  # (B, C_total)
        # torch.chunk(., n, dim=0) + per-chunk cat(dim=1) is already baked into
        # the fused output layout: only batch slicing remains.
        step = B // n
        return [full[i * step:(i + 1) * step] for i in range(n)]


if __name__ == "__main__":
    key = jax.random.PRNGKey(0)
    k_w, k_x = jax.random.split(key)

    in_features = 128   # cfg.MODEL.BACKBONE.BACKBONE_OUT_CHANNELS
    out_features = 256  # cfg.MODEL.FACE_HEADS.CLASS_NUMS (128 classes per shard)
    n_devices = 2       # len(GPUS)
    batch = 16          # divisible by n_devices

    model = DistFC(in_features, out_features, n_devices, k_w)

    # Each "device" holds a replica of the feature batch (as in the PyTorch head).
    x = jax.random.normal(k_x, (batch, in_features), dtype=jnp.float32)
    inputs = [x for _ in range(n_devices)]

    # tm=8 exercises the batch-tile grid axis even at this toy size.
    outs_bf16 = model(inputs, compute_dtype=jnp.bfloat16, tm=8)
    outs_bf16 = [jax.block_until_ready(o) for o in outs_bf16]
    outs_f32 = model(inputs, compute_dtype=jnp.float32, tm=8)
    outs_f32 = [jax.block_until_ready(o) for o in outs_f32]

    # Plain-JAX reference (per device shard, then chunk/cat like the module).
    step = batch // n_devices
    ref_blocks = []
    for d in range(n_devices):
        x_d = inputs[d]
        xn = x_d / jnp.maximum(jnp.linalg.norm(x_d, axis=-1, keepdims=True), 1e-12)
        w_d = model.w_stack[d]
        wn = w_d / jnp.maximum(jnp.linalg.norm(w_d, axis=-1, keepdims=True), 1e-12)
        ref_blocks.append(xn @ wn.T)
    ref_full = jnp.concatenate(ref_blocks, axis=1)
    ref_outs = [ref_full[i * step:(i + 1) * step] for i in range(n_devices)]

    assert len(outs_bf16) == len(outs_f32) == n_devices
    # Tolerance covers bf16 MXU operands (and XLA's default matmul precision in
    # the reference); cosine values are bounded by 1 up to that rounding.
    tol = 2e-2
    for obf, o32, r in zip(outs_bf16, outs_f32, ref_outs):
        assert obf.shape == (step, out_features)
        assert o32.shape == (step, out_features)
        assert bool(jnp.all(jnp.abs(obf) <= 1.0 + tol))
        assert bool(jnp.all(jnp.abs(o32) <= 1.0 + tol))
        assert bool(jnp.allclose(obf, r, atol=tol, rtol=tol))
        assert bool(jnp.allclose(o32, r, atol=tol, rtol=tol))

    # TODO(synk): Dist_Face_Head's loss branch (build_LargeMargin / CE / MSE) is
    # not implemented here because AddLargeMargin's definition is not provided.
    print("KERNEL_OK")
</pallas_src>

<mosaic_0001>
module attributes {stable_mosaic.version = 11 : i64} {
  func.func @_dist_cosine_kernel(%arg0: i32, %arg1: i32, %arg2: i32, %arg3: memref<1x8x128xf32, #tpu.memory_space<vmem>>, %arg4: memref<1x128x128xbf16, #tpu.memory_space<vmem>>, %arg5: memref<1x128xf32, #tpu.memory_space<vmem>>, %arg6: memref<8x128xf32, #tpu.memory_space<vmem>>) attributes {dimension_semantics = [#tpu.dimension_semantics<parallel>, #tpu.dimension_semantics<parallel>, #tpu.dimension_semantics<parallel>], iteration_bounds = array<i64: 2, 2, 1>, scalar_prefetch = 0 : i64, scratch_operands = 0 : i64, tpu.core_type = #tpu.core_type<tc>, window_params = [{transform_indices = @transform_0, window_bounds = array<i64: 1, 8, 128>}, {transform_indices = @transform_1, window_bounds = array<i64: 1, 128, 128>}, {transform_indices = @transform_2, window_bounds = array<i64: 1, 128>}, {transform_indices = @transform_3, window_bounds = array<i64: 8, 128>}]} {
    %c0 = arith.constant 0 : index
    %c0_0 = arith.constant 0 : index
    %c0_1 = arith.constant 0 : index
    %0 = vector.load %arg3[%c0, %c0_0, %c0_1] : memref<1x8x128xf32, #tpu.memory_space<vmem>>, vector<1x8x128xf32>
    %1 = vector.shape_cast %0 : vector<1x8x128xf32> to vector<8x128xf32>
    %2 = arith.mulf %1, %1 : vector<8x128xf32>
    %cst = arith.constant dense<0.000000e+00> : vector<8xf32>
    %3 = vector.multi_reduction <add>, %2, %cst [1] : vector<8x128xf32> to vector<8xf32>
    %4 = vector.shape_cast %3 : vector<8xf32> to vector<8x1xf32>
    %cst_2 = arith.constant 1.000000e-24 : f32
    %5 = vector.broadcast %cst_2 : f32 to vector<8x1xf32>
    %6 = arith.maximumf %4, %5 : vector<8x1xf32>
    %7 = math.rsqrt %6 : vector<8x1xf32>
    %8 = vector.broadcast %7 : vector<8x1xf32> to vector<8x128xf32>
    %9 = arith.mulf %1, %8 : vector<8x128xf32>
    %10 = arith.truncf %9 : vector<8x128xf32> to vector<8x128xbf16>
    %c0_3 = arith.constant 0 : index
    %c0_4 = arith.constant 0 : index
    %c0_5 = arith.constant 0 : index
    %11 = vector.load %arg4[%c0_3, %c0_4, %c0_5] : memref<1x128x128xbf16, #tpu.memory_space<vmem>>, vector<1x128x128xbf16>
    %12 = vector.shape_cast %11 : vector<1x128x128xbf16> to vector<128x128xbf16>
    %cst_6 = arith.constant dense<0.000000e+00> : vector<8x128xf32>
    %13 = tpu.matmul %10, %12, %cst_6 {dimension_numbers = #tpu.dot_dimension_numbers<[1], [1], [0], [0], [0, 0, 1, 0], [], []>} : vector<8x128xbf16>, vector<128x128xbf16>, vector<8x128xf32> -> vector<8x128xf32>
    %c0_7 = arith.constant 0 : index
    %c0_8 = arith.constant 0 : index
    %14 = vector.load %arg5[%c0_7, %c0_8] : memref<1x128xf32, #tpu.memory_space<vmem>>, vector<1x128xf32>
    %15 = vector.broadcast %14 : vector<1x128xf32> to vector<8x128xf32>
    %16 = arith.mulf %13, %15 : vector<8x128xf32>
    %c0_9 = arith.constant 0 : index
    %c0_10 = arith.constant 0 : index
    %17 = vector.load %arg6[%c0_9, %c0_10] : memref<8x128xf32, #tpu.memory_space<vmem>>, vector<8x128xf32>
    tpu.vector_store %arg6[%c0_9, %c0_10], %16 {strides = array<i32>} : memref<8x128xf32, #tpu.memory_space<vmem>>, vector<8x128xf32>,
    return
  }
  func.func @transform_0(%arg0: i32, %arg1: i32, %arg2: i32) -> (i32, i32, i32) {
    %c0_i32 = arith.constant 0 : i32
    %c0_i32_0 = arith.constant 0 : i32
    return %arg0, %arg1, %c0_i32 : i32, i32, i32
  }
  func.func @transform_1(%arg0: i32, %arg1: i32, %arg2: i32) -> (i32, i32, i32) {
    %c0_i32 = arith.constant 0 : i32
    %c0_i32_0 = arith.constant 0 : i32
    return %arg0, %arg2, %c0_i32 : i32, i32, i32
  }
  func.func @transform_2(%arg0: i32, %arg1: i32, %arg2: i32) -> (i32, i32) {
    %c1_i32 = arith.constant 1 : i32
    %0 = arith.muli %arg0, %c1_i32 : i32
    %1 = arith.addi %0, %arg2 : i32
    %c0_i32 = arith.constant 0 : i32
    %c0_i32_0 = arith.constant 0 : i32
    return %c0_i32, %1 : i32, i32
  }
  func.func @transform_3(%arg0: i32, %arg1: i32, %arg2: i32) -> (i32, i32) {
    %c1_i32 = arith.constant 1 : i32
    %0 = arith.muli %arg0, %c1_i32 : i32
    %1 = arith.addi %0, %arg2 : i32
    %c0_i32 = arith.constant 0 : i32
    return %arg1, %1 : i32, i32
  }
}

</mosaic_0001>

<llo_original>
// kernel: tpu_custom_call.1
$region0: #{tpu_custom_call.1}
  #allocation0 [shape = 'u32[]', space=smem, size = 0x4, offset = 0x4, fixed_abs, tag = 'smem constant byte address 0x4 - core index']
  #allocation1 [shape = 'u32[144,128]{1,0:T(1,128)}', space=vmem, size = 0x12000, scoped, tag = 'internal scratch']
  %s0 = inlined_call_operand.hbm [shape: f32[2,16,128], index: 0, kind: input, shape index: {}]
  %s1 = inlined_call_operand.hbm [shape: bf16[2,128,128], index: 1, kind: input, shape index: {}]
  %s2 = inlined_call_operand.vmem [shape: f32[1,256], index: 2, kind: input, shape index: {}]
  %s3 = inlined_call_operand.hbm [shape: f32[16,256], index: 3, kind: output, shape index: {}]
  %s4 = sld [smem:[#allocation0]]
  $region53: #{tpu_custom_call.1} parent=0
    _
  %s6 = ssub.s32 1, %s4
  %s7 = scalar_select 0, %s6, %s4
  $region1: #{tpu_custom_call.1} parent=0
    #allocation2 [shape = 'u8[8192]{0}', space=vmem, size = 0x2000, scoped, tag = 'input window, operand 0']
    #allocation3 [shape = 's32[2]{0}', space=sflag, size = 0x8, scoped, tag = 'scoped memory for tpu_custom_call.1']
    #allocation4 [shape = 's32[2]{0}', space=sflag, size = 0x8, scoped, tag = 'scoped memory for tpu_custom_call.1']
    #allocation5 [shape = 'u8[65536]{0}', space=vmem, size = 0x10000, scoped, tag = 'input window, operand 1']
    #allocation6 [shape = 's32[2]{0}', space=sflag, size = 0x8, scoped, tag = 'scoped memory for tpu_custom_call.1']
    #allocation7 [shape = 'u8[8192]{0}', space=vmem, size = 0x2000, scoped, tag = 'output window, operand 0']
    %8 = vsyncpa [#allocation3], 0
    %s9 = scalar_lea.sflag [#allocation3], 1
    %10 = vsyncpa %s9, 0
    %11 = vsyncpa [#allocation6], 0
    %s12 = scalar_lea.sflag [#allocation6], 1
    %13 = vsyncpa %s12, 0
    %14 = vsyncpa [#allocation4], 0
    %s15 = scalar_lea.sflag [#allocation4], 1
    %16 = vsyncpa %s15, 0
    loop: start=0, step=1, limit=6
    $region2: #{tpu_custom_call.1} parent=1 // loop_pre_header
      _
    $region3: #{tpu_custom_call.1} parent=1 // loop_header
      %s18 = sphi 0, %s22
      %p19 = scmp.ge.s32.totalorder %s18, 6
      %s25 = sphi 0, %s44
      %s26 = sphi 0, %s40
      %s27 = sphi 0, %s36
      %s28 = sphi 0, %s25
      %s29 = sphi 0, %s26
      %s30 = sphi 0, %s27
      %s31 = sphi 0, %s28
      %s32 = sphi 0, %s29
      %s33 = sphi 0, %s30
      %s49 = sphi 0, %s51
      %s52 = sphi 0, %s49
      %s53 = sphi 0, %s52
      %s69 = sphi 0, %s53
      %s77 = sphi 0, %s79
      %s80 = sphi 0, %s77
      %s81 = sphi 0, %s80
      %s97 = sphi 0, %s81
      %s105 = sphi 0, %s107
      %s108 = sphi 0, %s105
      %s109 = sphi 0, %s108
      %s125 = sphi 0, %s109
      %s135 = sphi 0, %s137
      %s138 = sphi 0, %s135
      %s139 = sphi 0, %s138
      %s155 = sphi 0, %s139
    $region4: #{tpu_custom_call.1} parent=1 // loop_header_branch
      %21 = sbr.rel (%p19) target = $region8
    $region5: #{tpu_custom_call.1} parent=1 // loop_body
      %s23 = ssub.s32 %s18, 1
      %s24 = ssub.s32 %s18, 2
      %s34 = sadd.s32 1, %s27
      %p35 = scmp.ge.s32.totalorder %s34, 1
      %s36 = scalar_select %p35, 0, %s34
      %s37 = sadd.s32 1, %s26
      %s38 = scalar_select %p35, %s37, %s26
      %p39 = scmp.ge.s32.totalorder %s38, 2
      %s40 = scalar_select %p39, 0, %s38
      %s41 = sadd.s32 1, %s25
      %s42 = scalar_select %p39, %s41, %s25
      %p43 = scmp.ge.s32.totalorder %s42, 2
      %s44 = scalar_select %p43, 0, %s42
      %s45 = ssub.s32 %s25, %s44
      %s46 = ssub.s32 %s26, %s40
      %s47 = sor.u32 %s45, %s46
      %p48 = scmp.eq.s32.totalorder %s47, 0
      %s50 = sadd.s32 %s49, 1
      %s51 = scalar_select %p48, %s49, %s50
      %p54 = pneg %p48
      %p55 = scmp.eq.s32.totalorder %s18, 3
      %p56 = por %p54, %p55
      %p57 = scmp.ne.s32.totalorder %s49, %s52
      %p58 = scmp.eq.s32.totalorder %s18, 0
      %p59 = por %p57, %p58
      %p60 = scmp.ne.s32.totalorder %s49, %s52
      %p61 = scmp.eq.s32.totalorder %s23, 3
      %p62 = por %p60, %p61
      %p63 = scmp.ne.s32.totalorder %s52, %s53
      %p64 = scmp.eq.s32.totalorder %s23, 0
      %p65 = por %p63, %p64
      %p66 = scmp.ne.s32.totalorder %s52, %s53
      %p67 = scmp.eq.s32.totalorder %s24, 3
      %p68 = por %p66, %p67
      %p70 = scmp.ne.s32.totalorder %s53, %s69
      %p71 = scmp.eq.s32.totalorder %s24, 0
      %p72 = por %p70, %p71
      %s73 = ssub.s32 %s25, %s44
      %s74 = ssub.s32 %s27, %s36
      %s75 = sor.u32 %s73, %s74
      %p76 = scmp.eq.s32.totalorder %s75, 0
      %s78 = sadd.s32 %s77, 1
      %s79 = scalar_select %p76, %s77, %s78
      %p82 = pneg %p76
      %p83 = scmp.eq.s32.totalorder %s18, 3
      %p84 = por %p82, %p83
      %p85 = scmp.ne.s32.totalorder %s77, %s80
      %p86 = scmp.eq.s32.totalorder %s18, 0
      %p87 = por %p85, %p86
      %p88 = scmp.ne.s32.totalorder %s77, %s80
      %p89 = scmp.eq.s32.totalorder %s23, 3
      %p90 = por %p88, %p89
      %p91 = scmp.ne.s32.totalorder %s80, %s81
      %p92 = scmp.eq.s32.totalorder %s23, 0
      %p93 = por %p91, %p92
      %p94 = scmp.ne.s32.totalorder %s80, %s81
      %p95 = scmp.eq.s32.totalorder %s24, 3
      %p96 = por %p94, %p95
      %p98 = scmp.ne.s32.totalorder %s81, %s97
      %p99 = scmp.eq.s32.totalorder %s24, 0
      %p100 = por %p98, %p99
      %s101 = sadd.s32 %s25, %s27
      %s102 = sadd.s32 %s44, %s36
      %s103 = ssub.s32 %s101, %s102
      %p104 = scmp.eq.s32.totalorder %s103, 0
      %s106 = sadd.s32 %s105, 1
      %s107 = scalar_select %p104, %s105, %s106
      %p110 = pneg %p104
      %p111 = scmp.eq.s32.totalorder %s18, 3
      %p112 = por %p110, %p111
      %p113 = scmp.ne.s32.totalorder %s105, %s108
      %p114 = scmp.eq.s32.totalorder %s18, 0
      %p115 = por %p113, %p114
      %p116 = scmp.ne.s32.totalorder %s105, %s108
      %p117 = scmp.eq.s32.totalorder %s23, 3
      %p118 = por %p116, %p117
      %p119 = scmp.ne.s32.totalorder %s108, %s109
      %p120 = scmp.eq.s32.totalorder %s23, 0
      %p121 = por %p119, %p120
      %p122 = scmp.ne.s32.totalorder %s108, %s109
      %p123 = scmp.eq.s32.totalorder %s24, 3
      %p124 = por %p122, %p123
      %p126 = scmp.ne.s32.totalorder %s109, %s125
      %p127 = scmp.eq.s32.totalorder %s24, 0
      %p128 = por %p126, %p127
      %s129 = sadd.s32 %s25, %s27
      %s130 = sadd.s32 %s44, %s36
      %s131 = ssub.s32 %s26, %s40
      %s132 = ssub.s32 %s129, %s130
      %s133 = sor.u32 %s131, %s132
      %p134 = scmp.eq.s32.totalorder %s133, 0
      %s136 = sadd.s32 %s135, 1
      %s137 = scalar_select %p134, %s135, %s136
      %p140 = pneg %p134
      %p141 = scmp.eq.s32.totalorder %s18, 3
      %p142 = por %p140, %p141
      %p143 = scmp.ne.s32.totalorder %s135, %s138
      %p144 = scmp.eq.s32.totalorder %s18, 0
      %p145 = por %p143, %p144
      %p146 = scmp.ne.s32.totalorder %s135, %s138
      %p147 = scmp.eq.s32.totalorder %s23, 3
      %p148 = por %p146, %p147
      %p149 = scmp.ne.s32.totalorder %s138, %s139
      %p150 = scmp.eq.s32.totalorder %s23, 0
      %p151 = por %p149, %p150
      %p152 = scmp.ne.s32.totalorder %s138, %s139
      %p153 = scmp.eq.s32.totalorder %s24, 3
      %p154 = por %p152, %p153
      %p156 = scmp.ne.s32.totalorder %s139, %s155
      %p157 = scmp.eq.s32.totalorder %s24, 0
      %p158 = por %p156, %p157
      %p159 = scmp.le.s32.totalorder 1, %s18
      %p160 = scmp.lt.s32.totalorder %s18, 5
      %p161 = pnand %p159, %p160
      %p162 = pneg %p161
      // Predicated region
      $region9: #{tpu_custom_call.1} parent=5 // pred_check
        _
      $region10: #{tpu_custom_call.1} parent=5 // pred_check_branch
        %164 = sbr.rel (%p161) target = $region12
      $region11: #{tpu_custom_call.1} parent=5 // pred_region
        %s165 = ssub.s32 %s18, 1
      $region12: #{tpu_custom_call.1} parent=5 // pred_fallthru
        _
      %p166 = scmp.lt.s32.totalorder %s18, 4
      // Predicated region
      $region13: #{tpu_custom_call.1} parent=5 // pred_check
        %p167 = pneg %p166
      $region14: #{tpu_custom_call.1} parent=5 // pred_check_branch
        %169 = sbr.rel (%p167) target = $region16
      $region15: #{tpu_custom_call.1} parent=5 // pred_region
        // Predicated region
        $region17: #{tpu_custom_call.1} parent=15 // pred_check
          %p170 = pneg %p59
        $region18: #{tpu_custom_call.1} parent=15 // pred_check_branch
          %172 = sbr.rel (%p170) target = $region20
        $region19: #{tpu_custom_call.1} parent=15 // pred_region
          %s173 = sand.u32 %s49, 1
          %s174 = scalar_lea.sflag [#allocation3], %s173
          %s175 = sand.u32 %s49, 1
          %s176 = smul.addr %s175, 8
          %s177 = scalar_lea.vmem [#allocation2], %s176
          %s179 = ssub.s32 128, 128
          %180 = vsyncadd %s174, %s179
          %s181 = smul.addr %s25, 2
          %s182 = sadd.s32 %s26, %s181
          %s183 = smul.addr %s182, 128
          %s184 = scalar_lea.hbm %s0, %s183
          %s186 = sshll.u32 %s177, 4
          %s187 = int_to_ptr.vmem [resolvable:$true] %s186
          %189 = dma.hbm_to_vmem [thread:$0]  %s184, 128, %s187, %s174
        $region20: #{tpu_custom_call.1} parent=15 // pred_fallthru
          _
        // Predicated region
        $region21: #{tpu_custom_call.1} parent=15 // pred_check
          %p190 = pneg %p87
        $region22: #{tpu_custom_call.1} parent=15 // pred_check_branch
          %192 = sbr.rel (%p190) target = $region24
        $region23: #{tpu_custom_call.1} parent=15 // pred_region
          %s193 = sand.u32 %s77, 1
          %s194 = scalar_lea.sflag [#allocation6], %s193
          %s195 = sand.u32 %s77, 1
          %s196 = smul.addr %s195, 64
          %s197 = scalar_lea.vmem [#allocation5], %s196
          %s198 = smul.u32 16, %s27
          %s200 = ssub.s32 1024, 1024
          %201 = vsyncadd %s194, %s200
          %s202 = smul.addr %s25, 16
          %s203 = sadd.s32 %s198, %s202
          %s204 = smul.addr %s203, 64
          %s205 = scalar_lea.hbm %s1, %s204
          %s206 = sshll.u32 %s197, 4
          %s207 = int_to_ptr.vmem [resolvable:$true] %s206
          %212 = dma.hbm_to_vmem [thread:$0]  %s205, 1024, %s207, %s194, 64, 64, 4
        $region24: #{tpu_custom_call.1} parent=15 // pred_fallthru
          _
        // Predicated region
        $region25: #{tpu_custom_call.1} parent=15 // pred_check
          %p213 = pneg %p115
        $region26: #{tpu_custom_call.1} parent=15 // pred_check_branch
          %215 = sbr.rel (%p213) target = $region28
        $region27: #{tpu_custom_call.1} parent=15 // pred_region
          %s216 = sadd.s32 %s25, %s27
          %p217 = scmp.lt.s32.totalorder %s216, 1
          %s218 = scalar_select %p217, %s216, 1
          %s219 = scalar_lea.vmem %s2, %s218
          %s220 = sadd.s32 %s25, %s27
        $region28: #{tpu_custom_call.1} parent=15 // pred_fallthru
          _
      $region16: #{tpu_custom_call.1} parent=5 // pred_fallthru
        _
      %p221 = scmp.le.s32.totalorder 1, %s18
      %p222 = scmp.lt.s32.totalorder %s18, 5
      %p223 = pnand %p221, %p222
      %p224 = pneg %p223
      // Predicated region
      $region29: #{tpu_custom_call.1} parent=5 // pred_check
        _
      $region30: #{tpu_custom_call.1} parent=5 // pred_check_branch
        %226 = sbr.rel (%p223) target = $region32
      $region31: #{tpu_custom_call.1} parent=5 // pred_region
        %s227 = ssub.s32 %s18, 1
        %s228 = sand.u32 %s52, 1
        %s229 = scalar_lea.sflag [#allocation3], %s228
        %s230 = sand.u32 %s52, 1
        %s231 = smul.addr %s230, 8
        %s232 = scalar_lea.vmem [#allocation2], %s231
        // Predicated region
        $region33: #{tpu_custom_call.1} parent=31 // pred_check
          %p233 = pneg %p65
        $region34: #{tpu_custom_call.1} parent=31 // pred_check_branch
          %235 = sbr.rel (%p233) target = $region36
        $region35: #{tpu_custom_call.1} parent=31 // pred_region
          %236 = dma.done %s229, 128
        $region36: #{tpu_custom_call.1} parent=31 // pred_fallthru
          _
        %s237 = sand.u32 %s80, 1
        %s238 = scalar_lea.sflag [#allocation6], %s237
        %s239 = sand.u32 %s80, 1
        %s240 = smul.addr %s239, 64
        %s241 = scalar_lea.vmem [#allocation5], %s240
        // Predicated region
        $region37: #{tpu_custom_call.1} parent=31 // pred_check
          %p242 = pneg %p93
        $region38: #{tpu_custom_call.1} parent=31 // pred_check_branch
          %244 = sbr.rel (%p242) target = $region40
        $region39: #{tpu_custom_call.1} parent=31 // pred_region
          %245 = dma.done %s238, 1024
        $region40: #{tpu_custom_call.1} parent=31 // pred_fallthru
          _
        %s246 = sand.u32 %s52, 1
        %s247 = scalar_lea.sflag [#allocation3], %s246
        %s248 = sand.u32 %s52, 1
        %s249 = smul.addr %s248, 8
        %s250 = scalar_lea.vmem [#allocation2], %s249
        %p251 = pneg %p65
        %p252 = pneg %p62
        %s253 = sand.u32 %s80, 1
        %s254 = scalar_lea.sflag [#allocation6], %s253
        %s255 = sand.u32 %s80, 1
        %s256 = smul.addr %s255, 64
        %s257 = scalar_lea.vmem [#allocation5], %s256
        %p258 = pneg %p93
        %p259 = pneg %p90
        %s260 = sadd.s32 %s28, %s30
        %p261 = scmp.lt.s32.totalorder %s260, 1
        %s262 = scalar_select %p261, %s260, 1
        %s263 = scalar_lea.vmem %s2, %s262
        %p264 = pneg %p121
        %p265 = pneg %p118
        %p266 = pneg %p151
        %p267 = pneg %p148
        %s268 = sand.u32 %s138, 1
        %s269 = scalar_lea.sflag [#allocation4], %s268
        %s270 = sand.u32 %s138, 1
        %s271 = smul.addr %s270, 8
        %s272 = scalar_lea.vmem [#allocation7], %s271
        %s273 = smul.u32 16, %s30
        %s274 = sadd.s32 %s28, %s30
        %p275 = scmp.lt.s32.totalorder %s274, 1
        %s276 = scalar_select %p275, %s274, 1
        %s277 = scalar_lea.vmem %s2, %s276
        %s278 = sadd.s32 %s28, %s30
        %s279 = sadd.s32 %s28, %s30
        %v281 = vld [vmem:[%s232] sm:$0xff]
        %v282 = vmul.f32 %v281, %v281
        %283 = vadd.xlane.f32.xlu0 %v282
        %v284 = vpop.xlane.xlu0 %283
        %v285 = vmax.f32 %v284, 1e-24
        %v286 = vrsqrt.pop %v285
        %v287 = vmul.f32 %v281, %v286
        %v288 = vpack.c.bf16 %v287, %v287
        %v289 = vld [vmem:[%s241] sm:$0xf]
        %v290 = vld [vmem:[%s241 + $0x4] sm:$0xf]
        %v291 = vld [vmem:[%s241 + $0x8] sm:$0xf]
        %v292 = vld [vmem:[%s241 + $0xc] sm:$0xf]
        %v293 = vld [vmem:[%s241 + $0x10] sm:$0xf]
        %v294 = vld [vmem:[%s241 + $0x14] sm:$0xf]
        %v295 = vld [vmem:[%s241 + $0x18] sm:$0xf]
        %v296 = vld [vmem:[%s241 + $0x1c] sm:$0xf]
        %v297 = vld [vmem:[%s241 + $0x20] sm:$0xf]
        %v298 = vld [vmem:[%s241 + $0x24] sm:$0xf]
        %v299 = vld [vmem:[%s241 + $0x28] sm:$0xf]
        %v300 = vld [vmem:[%s241 + $0x2c] sm:$0xf]
        %v301 = vld [vmem:[%s241 + $0x30] sm:$0xf]
        %v302 = vld [vmem:[%s241 + $0x34] sm:$0xf]
        %v303 = vld [vmem:[%s241 + $0x38] sm:$0xf]
        %v304 = vld [vmem:[%s241 + $0x3c] sm:$0xf]
        %v321 = vunpack.c.l.b16 %v289
        %v322 = vunpack.c.l.b16 %v290
        %v323 = vunpack.c.l.b16 %v291
        %v324 = vunpack.c.l.b16 %v292
        %v325 = vunpack.c.l.b16 %v293
        %v326 = vunpack.c.l.b16 %v294
        %v327 = vunpack.c.l.b16 %v295
        %v328 = vunpack.c.l.b16 %v296
        %v329 = vunpack.c.l.b16 %v297
        %v330 = vunpack.c.l.b16 %v298
        %v331 = vunpack.c.l.b16 %v299
        %v332 = vunpack.c.l.b16 %v300
        %v333 = vunpack.c.l.b16 %v301
        %v334 = vunpack.c.l.b16 %v302
        %v335 = vunpack.c.l.b16 %v303
        %v336 = vunpack.c.l.b16 %v304
        %v337 = vpack.c.b16 %v322, %v321
        %v338 = vpack.c.b16 %v324, %v323
        %v339 = vpack.c.b16 %v326, %v325
        %v340 = vpack.c.b16 %v328, %v327
        %v341 = vpack.c.b16 %v330, %v329
        %v342 = vpack.c.b16 %v332, %v331
        %v343 = vpack.c.b16 %v334, %v333
        %v344 = vpack.c.b16 %v336, %v335
        %353 = vmatprep.subr.bf16.mxu0 0
        %354 = vmatpush1.bf16.xpose.msra.mxu0 %v344
        %355 = vmatprep.subr.bf16.mxu0 0
        %356 = vmatpush1.bf16.xpose.msra.mxu0 %v343
        %357 = vmatprep.subr.bf16.mxu0 0
        %358 = vmatpush1.bf16.xpose.msra.mxu0 %v342
        %359 = vmatprep.subr.bf16.mxu0 0
        %360 = vmatpush1.bf16.xpose.msra.mxu0 %v341
        %361 = vmatprep.subr.bf16.mxu0 0
        %362 = vmatpush1.bf16.xpose.msra.mxu0 %v340
        %363 = vmatprep.subr.bf16.mxu0 0
        %364 = vmatpush1.bf16.xpose.msra.mxu0 %v339
        %365 = vmatprep.subr.bf16.mxu0 0
        %366 = vmatpush1.bf16.xpose.msra.mxu0 %v338
        %367 = vmatprep.subr.bf16.mxu0 0
        %368 = vmatpush1.bf16.xpose.msra.mxu0 %v337
        %369 = vmatprep.subr.bf16.mxu0 0
        %370 = vmatpush2.bf16.xpose.msra.mxu0 0
        %371 = vmatprep.subr.bf16.mxu0 0
        %372 = vmatpush2.bf16.xpose.msra.mxu0 0
        %373 = vmatprep.subr.bf16.mxu0 0
        %374 = vmatpush2.bf16.xpose.msra.mxu0 0
        %375 = vmatprep.subr.bf16.mxu0 0
        %376 = vmatpush2.bf16.xpose.msra.mxu0 0
        %377 = vmatprep.subr.bf16.mxu0 0
        %378 = vmatpush2.bf16.xpose.msra.mxu0 0
        %379 = vmatprep.subr.bf16.mxu0 0
        %380 = vmatpush2.bf16.xpose.msra.mxu0 0
        %381 = vmatprep.subr.bf16.mxu0 0
        %382 = vmatpush2.bf16.xpose.msra.mxu0 0
        %383 = vmatprep.subr.bf16.mxu0 0
        %384 = vmatpush2.bf16.xpose.msra.mxu0 0
        %385 = vmatprep.mubr.bf16.mxu0 0
        %386 = vmatmul.mubr.bf16.gmra.mxu0 %v288
        %v387 = vpop.f32.mrf.mxu0
        %v388 = vadd.f32 0.0, %v387
        %v389 = vpop.f32.mrf.mxu0
        %v390 = vpop.f32.mrf.mxu0
        %v391 = vpop.f32.mrf.mxu0
        %392 = vdwg.mxu0
        %v393 = vld [vmem:[%s277] sm:$0x1]
        %v395 = vlaneseq
        %v396 = vshrl.u32 %v395, 7
        %v397 = vsub.s32 0, %v396
        %v398 = vrot.slane %v393, %v397
        %v400 = vmul.f32 %v388, %v398
        %401 = vst [vmem:[%s272] sm:$0xff] %v400
        %s402 = sand.u32 %s138, 1
        %s403 = scalar_lea.sflag [#allocation4], %s402
        %s404 = sand.u32 %s138, 1
        %s405 = smul.addr %s404, 8
        %s406 = scalar_lea.vmem [#allocation7], %s405
        // Predicated region
        $region41: #{tpu_custom_call.1} parent=31 // pred_check
          %p407 = pneg %p148
        $region42: #{tpu_custom_call.1} parent=31 // pred_check_branch
          %409 = sbr.rel (%p407) target = $region44
        $region43: #{tpu_custom_call.1} parent=31 // pred_region
          %s410 = sadd.s32 %s28, %s30
          %s412 = ssub.s32 128, 128
          %413 = vsyncadd %s403, %s412
          %s414 = smul.addr %s29, 2
          %s415 = sadd.s32 %s410, %s414
          %s416 = smul.addr %s415, 128
          %s417 = scalar_lea.hbm %s3, %s416
          %s419 = sshll.u32 %s406, 4
          %s420 = int_to_ptr.vmem [resolvable:$true] %s419
          %422 = dma.vmem_to_hbm [thread:$0]  %s420, 128, %s417, %s403
        $region44: #{tpu_custom_call.1} parent=31 // pred_fallthru
          _
      $region32: #{tpu_custom_call.1} parent=5 // pred_fallthru
        _
      %p423 = scmp.le.s32.totalorder 2, %s18
      // Predicated region
      $region45: #{tpu_custom_call.1} parent=5 // pred_check
        %p424 = pneg %p423
      $region46: #{tpu_custom_call.1} parent=5 // pred_check_branch
        %426 = sbr.rel (%p424) target = $region48
      $region47: #{tpu_custom_call.1} parent=5 // pred_region
        %s427 = ssub.s32 %s18, 2
        // Predicated region
        $region49: #{tpu_custom_call.1} parent=47 // pred_check
          %p428 = pneg %p154
        $region50: #{tpu_custom_call.1} parent=47 // pred_check_branch
          %430 = sbr.rel (%p428) target = $region52
        $region51: #{tpu_custom_call.1} parent=47 // pred_region
          %s431 = sand.u32 %s139, 1
          %s432 = scalar_lea.sflag [#allocation4], %s431
          %s433 = sand.u32 %s139, 1
          %s434 = smul.addr %s433, 8
          %s435 = scalar_lea.vmem [#allocation7], %s434
          %436 = dma.done %s432, 128
        $region52: #{tpu_custom_call.1} parent=47 // pred_fallthru
          _
      $region48: #{tpu_custom_call.1} parent=5 // pred_fallthru
        _
    $region6: #{tpu_custom_call.1} parent=1 // loop_footer
      %s22 = sadd.s32 1, %s18
    $region7: #{tpu_custom_call.1} parent=1 // loop_footer_branch
      %17 = sbr.rel target = $region3
    $region8: #{tpu_custom_call.1} parent=1 // loop_exit
      _
    %437 = vsyncpa [#allocation3], 1
    %s438 = scalar_lea.sflag [#allocation3], 1
    %439 = vsyncpa %s438, 1
    %440 = vsyncpa [#allocation6], 1
    %s441 = scalar_lea.sflag [#allocation6], 1
    %442 = vsyncpa %s441, 1
    %443 = vsyncpa [#allocation4], 1
    %s444 = scalar_lea.sflag [#allocation4], 1
    %445 = vsyncpa %s444, 1

</llo_original>
